<compile_context>
chip_gen: v7x
topology: tpu7x:2x2x1
jax: 0.10.0
libtpu: 0.0.40
codegen_flags: <defaults>
</compile_context>

<pallas_src>
import jax
import jax.numpy as jnp
from jax.experimental import pallas as pl
from jax.experimental.pallas import tpu as pltpu


# Below this many bytes the plain XLA slice is strictly faster than any
# pallas_call (fixed launch overhead dominates a KiB-scale copy).
_SMALL_FAST_PATH_BYTES = 1 << 20  # ~1 MiB


def _pos_embed_dma_kernel(emb_hbm, out_hbm, sem):
    """Single HBM->HBM DMA: rows [0, L) of the table -> output slab.

    No VMEM staging, no TensorCore loads/stores -- the DMA engine does the
    whole copy while the TC only issues the descriptor and waits.
    """
    L = out_hbm.shape[0]  # static at trace time
    cp = pltpu.make_async_copy(emb_hbm.at[pl.ds(0, L)], out_hbm, sem)
    cp.start()
    cp.wait()


def transformer_position_embed(x, emb_table, *, force_pallas=False):
    """Returns h with shape (len(x), 1, embed_dim), matching the torch module."""
    L = x.shape[0]
    V, E = emb_table.shape  # (num_max_positions, embed_dim)
    assert L <= V, "sequence length exceeds num_max_positions"

    itemsize = jnp.dtype(emb_table.dtype).itemsize
    total_bytes = L * E * itemsize

    # --- Small-size fast path -------------------------------------------------
    # The op is just emb_table[:L]; at KiB scale an XLA slice beats any kernel.
    if total_bytes < _SMALL_FAST_PATH_BYTES and not force_pallas:
        return emb_table[:L][:, None, :]

    # --- Pallas path: direct HBM->HBM DMA --------------------------------------
    # Both operands stay in HBM (pl.ANY); the kernel runs once (no grid) and
    # issues a single contiguous-row DMA of the first L rows of the table into
    # the output buffer.
    out2d = pl.pallas_call(
        _pos_embed_dma_kernel,
        out_shape=jax.ShapeDtypeStruct((L, E), emb_table.dtype),
        in_specs=[pl.BlockSpec(memory_space=pl.ANY)],
        out_specs=pl.BlockSpec(memory_space=pl.ANY),
        scratch_shapes=[pltpu.SemaphoreType.DMA(())],
    )(emb_table)

    # unsqueeze(-1) on positions in torch yields output shape (L, 1, E).
    # Adding the degenerate middle dim here is a metadata-only reshape.
    return out2d[:, None, :]


if __name__ == "__main__":
    # Module hyperparameters (small, TPU-friendly).
    embed_dim = 128
    hidden_dim = 256          # unused by forward
    num_embeddings = 32       # unused by forward
    num_max_positions = 16
    num_heads = 4             # unused by forward
    num_layers = 2            # unused by forward
    dropout = 0.1             # unused by forward

    key = jax.random.PRNGKey(0)
    k_emb, k_x, k_emb_big = jax.random.split(key, 3)

    # nn.Embedding default init: N(0, 1)
    position_embeddings = jax.random.normal(
        k_emb, (num_max_positions, embed_dim), dtype=jnp.float32
    )

    # x: (seq_len, batch) of token ids; only len(x) matters for this forward.
    seq_len, batch = 8, 2
    x = jax.random.randint(k_x, (seq_len, batch), 0, num_embeddings, dtype=jnp.int32)

    # --- Path 1: module-scale sizes -> small fast path (pure XLA slice) -------
    h = transformer_position_embed(x, position_embeddings)
    h = jax.block_until_ready(h)
    ref = position_embeddings[jnp.arange(seq_len)][:, None, :]
    assert h.shape == (seq_len, 1, embed_dim), h.shape
    assert h.dtype == jnp.float32
    assert jnp.allclose(h, ref), "fast-path mismatch vs reference embedding lookup"

    # --- Path 2: exercise the Pallas HBM->HBM DMA kernel on TPU ---------------
    # Modest larger table so the kernel path is actually run and verified.
    big_pos, big_e = 1024, 256
    big_table = jax.random.normal(k_emb_big, (big_pos, big_e), dtype=jnp.float32)
    big_len = 768
    x_big = jnp.zeros((big_len, batch), dtype=jnp.int32)

    h_big = transformer_position_embed(x_big, big_table, force_pallas=True)
    h_big = jax.block_until_ready(h_big)
    ref_big = big_table[:big_len][:, None, :]
    assert h_big.shape == (big_len, 1, big_e), h_big.shape
    assert jnp.allclose(h_big, ref_big), "DMA-path mismatch vs reference embedding lookup"

    print("KERNEL_OK")
</pallas_src>

<mosaic_0001>
module attributes {stable_mosaic.version = 11 : i64} {
  func.func @_pos_embed_dma_kernel(%arg0: memref<1024x256xf32, #tpu.memory_space<any>>, %arg1: memref<768x256xf32, #tpu.memory_space<any>>, %arg2: memref<!tpu.dma_semaphore, #tpu.memory_space<semaphore_mem>>) attributes {dimension_semantics = [], scalar_prefetch = 0 : i64, scratch_operands = 1 : i64, tpu.core_type = #tpu.core_type<tc>} {
    %c0_i32 = arith.constant 0 : i32
    %c0_i32_0 = arith.constant 0 : i32
    %0 = tpu.memref_slice %arg0[%c0_i32, %c0_i32_0] : memref<1024x256xf32, #tpu.memory_space<any>> -> memref<768x256xf32, #tpu.memory_space<any>>
    tpu.enqueue_dma source(%0 : memref<768x256xf32, #tpu.memory_space<any>>) target(%arg1 : memref<768x256xf32, #tpu.memory_space<any>>) target_semaphore(%arg2 : memref<!tpu.dma_semaphore, #tpu.memory_space<semaphore_mem>>)
    %c0_i32_1 = arith.constant 0 : i32
    %c0_i32_2 = arith.constant 0 : i32
    %1 = tpu.memref_slice %arg0[%c0_i32_1, %c0_i32_2] : memref<1024x256xf32, #tpu.memory_space<any>> -> memref<768x256xf32, #tpu.memory_space<any>>
    tpu.wait_dma2 semaphore(%arg2 : memref<!tpu.dma_semaphore, #tpu.memory_space<semaphore_mem>>) src(%1 : memref<768x256xf32, #tpu.memory_space<any>>) dst(%arg1 : memref<768x256xf32, #tpu.memory_space<any>>)
    return
  }
}

</mosaic_0001>

<llo_original>
// kernel: tpu_custom_call.1
$region0: #{tpu_custom_call.1}
  #allocation0 [shape = 'u32[]', space=smem, size = 0x4, offset = 0x4, fixed_abs, tag = 'smem constant byte address 0x4 - core index']
  #allocation1 [shape = 'u32[144,128]{1,0:T(1,128)}', space=vmem, size = 0x12000, scoped, tag = 'internal scratch']
  #allocation2 [shape = 's32[1]{0}', space=sflag, size = 0x4, scoped, tag = 'scratch operand']
  #allocation3 [shape = 's32[]', space=sflag, size = 0x4, offset = 0, fixed_abs, tag = 'sflag constant byte address 0x0 - dummy sync flag']
  #allocation4 [shape = 'u32[0]{0}', space=smem, size = 0, offset = 0, fixed_abs, tag = 'smem constant byte address 0x0 - null']
  %s0 = inlined_call_operand.hbm [shape: f32[1024,256], index: 0, kind: input, shape index: {}]
  %s1 = inlined_call_operand.hbm [shape: f32[768,256], index: 1, kind: output, shape index: {}]
  %s2 = sld [smem:[#allocation0]]
  $region2: #{tpu_custom_call.1} parent=0
    _
  %s4 = ssub.s32 1, %s2
  %s5 = scalar_select 0, %s4, %s2
  %s7 = sshll.u32 1, 14
  %s8 = sxor.u32 4294967295, %s7
  %s11 = sshll.u32 3, 24
  %s12 = sxor.u32 4294967295, %s11
  %s13 = sand.u32 0, %s12
  %s15 = sor.u32 %s13, 0
  %18 = dma.general %s0, 24576, %s1, [#allocation2], [#allocation3], [#allocation4], %s15, 0
  %s19 = smul.u32 8, 96
  %s20 = smul.u32 %s19, 2
  %s21 = sshll.u32 %s20, 4
  %22 = dma.done [#allocation2], %s21
  %23 = vsyncmov [#allocation2]
  %s24 = vpop.sfrf %23
  %p25 = scmp.eq.s32.totalorder %s24, 0
  %p26 = pneg %p25
  %28 = shalt.err (%p26)

</llo_original>
